<compile_context>
chip_gen: v5e
topology: v5e:2x2
jax: 0.10.0
libtpu: 0.0.40
codegen_flags: <defaults>
</compile_context>

<pallas_src>
import functools
import math

import jax
import jax.numpy as jnp
from jax.experimental import pallas as pl
from jax.experimental.pallas import tpu as pltpu

N_LAYERS = 3   # conv1..conv3 are applied in forward; conv4 exists but is unused.
NM_PAD = 16    # machine rows padded to a 16-sublane (bf16 tile) boundary in the stacked buffer


# ----------------------------------------------------------------------------
# Fused Pallas kernel: full 3-layer HGCN forward (both relations, all layers).
# ----------------------------------------------------------------------------
def _hgcn_fused_kernel(a_ref, h_ref, wbt_ref, wtt_ref, bbt_ref, btt_ref,
                       om_ref, op_ref):
    a = a_ref[...]                      # (32, 32)  bf16 block adjacency [[0, a_bt],[a_tt, 0]]
    h = h_ref[...]                      # (32, 128) bf16 stacked nodes [machine_pad ; piece]
    n_machine = om_ref.shape[0]         # real machine count (<= NM_PAD)

    out_m = None
    out_p = None
    for layer in range(N_LAYERS):       # static unroll: 3 layers, everything stays in vregs
        # One block dot gives both relations' mean-aggregated neighbor features.
        neigh = jnp.dot(a, h, preferred_element_type=jnp.float32).astype(jnp.bfloat16)

        # BELONGS_TO (dst = machine, rows [0, NM_PAD)):  split K=128 dots, no lane concat.
        out_m = (jnp.dot(neigh[:NM_PAD], wbt_ref[layer, 0],
                         preferred_element_type=jnp.float32)
                 + jnp.dot(h[:NM_PAD], wbt_ref[layer, 1],
                           preferred_element_type=jnp.float32)
                 + bbt_ref[layer])
        # TRANSFERS_TO (dst = piece, rows [NM_PAD, 32)).
        out_p = (jnp.dot(neigh[NM_PAD:], wtt_ref[layer, 0],
                         preferred_element_type=jnp.float32)
                 + jnp.dot(h[NM_PAD:], wtt_ref[layer, 1],
                           preferred_element_type=jnp.float32)
                 + btt_ref[layer])

        out_m = jnp.maximum(out_m, 0.0)                 # ReLU in f32
        out_p = jnp.maximum(out_p, 0.0)

        if layer + 1 < N_LAYERS:
            # carry activations in bf16 (tile-aligned sublane concat: 2 bf16 vregs)
            h = jnp.concatenate([out_m.astype(jnp.bfloat16),
                                 out_p.astype(jnp.bfloat16)], axis=0)

    om_ref[...] = out_m[:n_machine]     # drop the padded machine rows (8-sublane aligned)
    op_ref[...] = out_p


def _full(shape):
    # whole-array block (block_shape == array dims satisfies the (8,128) rule)
    return pl.BlockSpec(shape, lambda: (0,) * len(shape))


def hgcn_forward(a_block, h_nodes, w_bt, w_tt, b_bt, b_tt, *, n_machine, n_piece):
    """One kernel launch for the whole HGCN forward. Returns dict of dst-type features."""
    ntot, f = h_nodes.shape
    assert ntot == NM_PAD + n_piece and n_machine <= NM_PAD

    out_machine, out_piece = pl.pallas_call(
        _hgcn_fused_kernel,
        out_shape=(jax.ShapeDtypeStruct((n_machine, f), jnp.float32),
                   jax.ShapeDtypeStruct((n_piece, f), jnp.float32)),
        in_specs=[
            _full(a_block.shape),   # (32, 32)      bf16
            _full(h_nodes.shape),   # (32, 128)     bf16
            _full(w_bt.shape),      # (3, 2, F, F)  bf16  [W_neigh^T, W_self^T] per layer
            _full(w_tt.shape),      # (3, 2, F, F)  bf16
            _full(b_bt.shape),      # (3, 1, F)     f32
            _full(b_tt.shape),      # (3, 1, F)     f32
        ],
        out_specs=(_full((n_machine, f)), _full((n_piece, f))),
        compiler_params=pltpu.CompilerParams(vmem_limit_bytes=32 * 1024 * 1024),
    )(a_block, h_nodes, w_bt, w_tt, b_bt, b_tt)
    return {"machine": out_machine, "piece": out_piece}


# ----------------------------------------------------------------------------
# Glue: synthetic heterograph, deterministic parameters.
# ----------------------------------------------------------------------------
def build_norm_adj(src, dst, n_src, n_dst):
    a = jnp.zeros((n_dst, n_src), jnp.float32).at[dst, src].add(1.0)
    deg = jnp.clip(jnp.sum(a, axis=1, keepdims=True), 1.0, None)  # mean; 0-deg rows stay 0
    return a / deg


def init_sage_params(key, feats):
    # DGL SAGEConv: xavier_uniform(gain=relu) on fc_self / fc_neigh (bias=False) + zero bias.
    # Weights stored pre-transposed and stacked as [W_neigh^T, W_self^T] -> (2, F, F).
    k1, k2 = jax.random.split(key)
    gain = math.sqrt(2.0)
    limit = gain * math.sqrt(6.0 / (feats + feats))
    w_self_t = jax.random.uniform(k1, (feats, feats), jnp.float32, -limit, limit)
    w_neigh_t = jax.random.uniform(k2, (feats, feats), jnp.float32, -limit, limit)
    w = jnp.stack([w_neigh_t, w_self_t], axis=0)   # (2, F, F)
    bias = jnp.zeros((1, feats), jnp.float32)
    return w, bias


if __name__ == "__main__":
    HID_FEATS = 128
    N_PIECE, N_MACHINE = 16, 8

    key = jax.random.PRNGKey(0)
    k_feat_p, k_feat_m, k_params = jax.random.split(key, 3)

    # node features
    h_piece = jax.random.normal(k_feat_p, (N_PIECE, HID_FEATS), jnp.float32)
    h_machine = jax.random.normal(k_feat_m, (N_MACHINE, HID_FEATS), jnp.float32)

    # deterministic synthetic heterograph
    # BELONGS_TO: piece i -> machine (i mod N_MACHINE)
    bt_src = jnp.arange(N_PIECE)
    bt_dst = jnp.arange(N_PIECE) % N_MACHINE
    # TRANSFERS_TO: machine j -> piece ((2j + 1) mod N_PIECE)
    tt_src = jnp.arange(N_MACHINE)
    tt_dst = (2 * jnp.arange(N_MACHINE) + 1) % N_PIECE
    a_bt = build_norm_adj(bt_src, bt_dst, N_PIECE, N_MACHINE)     # (Nm, Np) row-normalized
    a_tt = build_norm_adj(tt_src, tt_dst, N_MACHINE, N_PIECE)     # (Np, Nm) row-normalized

    # host-side: block adjacency + stacked node buffer, padded to 32 rows, bf16
    ntot = NM_PAD + N_PIECE
    a_block = jnp.zeros((ntot, ntot), jnp.float32)
    a_block = a_block.at[:N_MACHINE, NM_PAD:].set(a_bt)           # machine <- piece
    a_block = a_block.at[NM_PAD:, :N_MACHINE].set(a_tt)           # piece   <- machine
    a_block = a_block.astype(jnp.bfloat16)

    h_nodes = jnp.zeros((ntot, HID_FEATS), jnp.float32)
    h_nodes = h_nodes.at[:N_MACHINE].set(h_machine)
    h_nodes = h_nodes.at[NM_PAD:].set(h_piece)
    h_nodes = h_nodes.astype(jnp.bfloat16)

    # parameters: 4 HeteroGraphConv layers x 2 relations (conv4 initialized but unused,
    # matching the PyTorch module); only the first 3 are stacked for the kernel.
    w_bt_layers, b_bt_layers, w_tt_layers, b_tt_layers = [], [], [], []
    for lk in jax.random.split(k_params, 4):
        kb, kt = jax.random.split(lk)
        wb, bb = init_sage_params(kb, HID_FEATS)
        wt, bt = init_sage_params(kt, HID_FEATS)
        w_bt_layers.append(wb); b_bt_layers.append(bb)
        w_tt_layers.append(wt); b_tt_layers.append(bt)

    w_bt = jnp.stack(w_bt_layers[:N_LAYERS]).astype(jnp.bfloat16)   # (3, 2, F, F)
    w_tt = jnp.stack(w_tt_layers[:N_LAYERS]).astype(jnp.bfloat16)   # (3, 2, F, F)
    b_bt = jnp.stack(b_bt_layers[:N_LAYERS])                        # (3, 1, F) f32
    b_tt = jnp.stack(b_tt_layers[:N_LAYERS])                        # (3, 1, F) f32

    # TODO(synk): feat_drop is treated as eval-mode (p=0) — no dropout randomness in the kernel.
    fwd = jax.jit(functools.partial(hgcn_forward, n_machine=N_MACHINE, n_piece=N_PIECE))
    out = fwd(a_block, h_nodes, w_bt, w_tt, b_bt, b_tt)
    jax.block_until_ready(out)

    # ------------------------------------------------------------------
    # sanity: pure-JAX reference with identical bf16 operand rounding.
    # ------------------------------------------------------------------
    def bf16_round(x):
        return x.astype(jnp.bfloat16).astype(jnp.float32)

    a_bt_r, a_tt_r = bf16_round(a_bt), bf16_round(a_tt)
    hm_r, hp_r = bf16_round(h_machine), bf16_round(h_piece)
    for layer in range(N_LAYERS):
        wbn = w_bt[layer, 0].astype(jnp.float32)
        wbs = w_bt[layer, 1].astype(jnp.float32)
        wtn = w_tt[layer, 0].astype(jnp.float32)
        wts = w_tt[layer, 1].astype(jnp.float32)
        neigh_m = bf16_round(a_bt_r @ hp_r)
        neigh_p = bf16_round(a_tt_r @ hm_r)
        out_m = jnp.maximum(neigh_m @ wbn + hm_r @ wbs + b_bt[layer], 0.0)
        out_p = jnp.maximum(neigh_p @ wtn + hp_r @ wts + b_tt[layer], 0.0)
        if layer + 1 < N_LAYERS:
            hm_r, hp_r = bf16_round(out_m), bf16_round(out_p)
        else:
            hm_r, hp_r = out_m, out_p

    assert jnp.allclose(out["machine"], hm_r, atol=1e-2, rtol=1e-2)
    assert jnp.allclose(out["piece"], hp_r, atol=1e-2, rtol=1e-2)

    print("KERNEL_OK")
</pallas_src>

<mosaic_0001>
module attributes {stable_mosaic.version = 11 : i64} {
  func.func @_hgcn_fused_kernel(%arg0: memref<32x32xbf16, #tpu.memory_space<vmem>>, %arg1: memref<32x128xbf16, #tpu.memory_space<vmem>>, %arg2: memref<3x2x128x128xbf16, #tpu.memory_space<vmem>>, %arg3: memref<3x2x128x128xbf16, #tpu.memory_space<vmem>>, %arg4: memref<3x1x128xf32, #tpu.memory_space<vmem>>, %arg5: memref<3x1x128xf32, #tpu.memory_space<vmem>>, %arg6: memref<8x128xf32, #tpu.memory_space<vmem>>, %arg7: memref<16x128xf32, #tpu.memory_space<vmem>>) attributes {dimension_semantics = [], scalar_prefetch = 0 : i64, scratch_operands = 0 : i64, tpu.core_type = #tpu.core_type<tc>} {
    %c0 = arith.constant 0 : index
    %c0_0 = arith.constant 0 : index
    %0 = vector.load %arg0[%c0, %c0_0] : memref<32x32xbf16, #tpu.memory_space<vmem>>, vector<32x32xbf16>
    %c0_1 = arith.constant 0 : index
    %c0_2 = arith.constant 0 : index
    %1 = vector.load %arg1[%c0_1, %c0_2] : memref<32x128xbf16, #tpu.memory_space<vmem>>, vector<32x128xbf16>
    %cst = arith.constant dense<0.000000e+00> : vector<32x128xf32>
    %2 = tpu.matmul %0, %1, %cst {dimension_numbers = #tpu.dot_dimension_numbers<[1], [0], [0], [1], [0, 0, 1, 1], [], []>} : vector<32x32xbf16>, vector<32x128xbf16>, vector<32x128xf32> -> vector<32x128xf32>
    %3 = arith.truncf %2 : vector<32x128xf32> to vector<32x128xbf16>
    %4 = vector.extract_strided_slice %3 {offsets = [0, 0], sizes = [16, 128], strides = [1, 1]} : vector<32x128xbf16> to vector<16x128xbf16>
    %c0_3 = arith.constant 0 : index
    %c0_4 = arith.constant 0 : index
    %c0_5 = arith.constant 0 : index
    %c0_6 = arith.constant 0 : index
    %5 = vector.load %arg2[%c0_3, %c0_4, %c0_5, %c0_6] : memref<3x2x128x128xbf16, #tpu.memory_space<vmem>>, vector<1x1x128x128xbf16>
    %6 = vector.shape_cast %5 : vector<1x1x128x128xbf16> to vector<128x128xbf16>
    %cst_7 = arith.constant dense<0.000000e+00> : vector<16x128xf32>
    %7 = tpu.matmul %4, %6, %cst_7 {dimension_numbers = #tpu.dot_dimension_numbers<[1], [0], [0], [1], [0, 0, 1, 1], [], []>} : vector<16x128xbf16>, vector<128x128xbf16>, vector<16x128xf32> -> vector<16x128xf32>
    %8 = vector.extract_strided_slice %1 {offsets = [0, 0], sizes = [16, 128], strides = [1, 1]} : vector<32x128xbf16> to vector<16x128xbf16>
    %c0_8 = arith.constant 0 : index
    %c1 = arith.constant 1 : index
    %c0_9 = arith.constant 0 : index
    %c0_10 = arith.constant 0 : index
    %9 = vector.load %arg2[%c0_8, %c1, %c0_9, %c0_10] : memref<3x2x128x128xbf16, #tpu.memory_space<vmem>>, vector<1x1x128x128xbf16>
    %10 = vector.shape_cast %9 : vector<1x1x128x128xbf16> to vector<128x128xbf16>
    %cst_11 = arith.constant dense<0.000000e+00> : vector<16x128xf32>
    %11 = tpu.matmul %8, %10, %cst_11 {dimension_numbers = #tpu.dot_dimension_numbers<[1], [0], [0], [1], [0, 0, 1, 1], [], []>} : vector<16x128xbf16>, vector<128x128xbf16>, vector<16x128xf32> -> vector<16x128xf32>
    %12 = arith.addf %7, %11 : vector<16x128xf32>
    %c0_12 = arith.constant 0 : index
    %c0_13 = arith.constant 0 : index
    %c0_14 = arith.constant 0 : index
    %13 = vector.load %arg4[%c0_12, %c0_13, %c0_14] : memref<3x1x128xf32, #tpu.memory_space<vmem>>, vector<1x1x128xf32>
    %14 = vector.shape_cast %13 : vector<1x1x128xf32> to vector<1x128xf32>
    %15 = vector.broadcast %14 : vector<1x128xf32> to vector<16x128xf32>
    %16 = arith.addf %12, %15 : vector<16x128xf32>
    %17 = vector.extract_strided_slice %3 {offsets = [16, 0], sizes = [16, 128], strides = [1, 1]} : vector<32x128xbf16> to vector<16x128xbf16>
    %c0_15 = arith.constant 0 : index
    %c0_16 = arith.constant 0 : index
    %c0_17 = arith.constant 0 : index
    %c0_18 = arith.constant 0 : index
    %18 = vector.load %arg3[%c0_15, %c0_16, %c0_17, %c0_18] : memref<3x2x128x128xbf16, #tpu.memory_space<vmem>>, vector<1x1x128x128xbf16>
    %19 = vector.shape_cast %18 : vector<1x1x128x128xbf16> to vector<128x128xbf16>
    %cst_19 = arith.constant dense<0.000000e+00> : vector<16x128xf32>
    %20 = tpu.matmul %17, %19, %cst_19 {dimension_numbers = #tpu.dot_dimension_numbers<[1], [0], [0], [1], [0, 0, 1, 1], [], []>} : vector<16x128xbf16>, vector<128x128xbf16>, vector<16x128xf32> -> vector<16x128xf32>
    %21 = vector.extract_strided_slice %1 {offsets = [16, 0], sizes = [16, 128], strides = [1, 1]} : vector<32x128xbf16> to vector<16x128xbf16>
    %c0_20 = arith.constant 0 : index
    %c1_21 = arith.constant 1 : index
    %c0_22 = arith.constant 0 : index
    %c0_23 = arith.constant 0 : index
    %22 = vector.load %arg3[%c0_20, %c1_21, %c0_22, %c0_23] : memref<3x2x128x128xbf16, #tpu.memory_space<vmem>>, vector<1x1x128x128xbf16>
    %23 = vector.shape_cast %22 : vector<1x1x128x128xbf16> to vector<128x128xbf16>
    %cst_24 = arith.constant dense<0.000000e+00> : vector<16x128xf32>
    %24 = tpu.matmul %21, %23, %cst_24 {dimension_numbers = #tpu.dot_dimension_numbers<[1], [0], [0], [1], [0, 0, 1, 1], [], []>} : vector<16x128xbf16>, vector<128x128xbf16>, vector<16x128xf32> -> vector<16x128xf32>
    %25 = arith.addf %20, %24 : vector<16x128xf32>
    %c0_25 = arith.constant 0 : index
    %c0_26 = arith.constant 0 : index
    %c0_27 = arith.constant 0 : index
    %26 = vector.load %arg5[%c0_25, %c0_26, %c0_27] : memref<3x1x128xf32, #tpu.memory_space<vmem>>, vector<1x1x128xf32>
    %27 = vector.shape_cast %26 : vector<1x1x128xf32> to vector<1x128xf32>
    %28 = vector.broadcast %27 : vector<1x128xf32> to vector<16x128xf32>
    %29 = arith.addf %25, %28 : vector<16x128xf32>
    %cst_28 = arith.constant 0.000000e+00 : f32
    %30 = vector.broadcast %cst_28 : f32 to vector<16x128xf32>
    %31 = arith.maximumf %16, %30 : vector<16x128xf32>
    %cst_29 = arith.constant 0.000000e+00 : f32
    %32 = vector.broadcast %cst_29 : f32 to vector<16x128xf32>
    %33 = arith.maximumf %29, %32 : vector<16x128xf32>
    %34 = arith.truncf %31 : vector<16x128xf32> to vector<16x128xbf16>
    %35 = arith.truncf %33 : vector<16x128xf32> to vector<16x128xbf16>
    %36 = tpu.concatenate %34, %35 in 0 : vector<16x128xbf16>, vector<16x128xbf16> -> vector<32x128xbf16>
    %cst_30 = arith.constant dense<0.000000e+00> : vector<32x128xf32>
    %37 = tpu.matmul %0, %36, %cst_30 {dimension_numbers = #tpu.dot_dimension_numbers<[1], [0], [0], [1], [0, 0, 1, 1], [], []>} : vector<32x32xbf16>, vector<32x128xbf16>, vector<32x128xf32> -> vector<32x128xf32>
    %38 = arith.truncf %37 : vector<32x128xf32> to vector<32x128xbf16>
    %39 = vector.extract_strided_slice %38 {offsets = [0, 0], sizes = [16, 128], strides = [1, 1]} : vector<32x128xbf16> to vector<16x128xbf16>
    %c1_31 = arith.constant 1 : index
    %c0_32 = arith.constant 0 : index
    %c0_33 = arith.constant 0 : index
    %c0_34 = arith.constant 0 : index
    %40 = vector.load %arg2[%c1_31, %c0_32, %c0_33, %c0_34] : memref<3x2x128x128xbf16, #tpu.memory_space<vmem>>, vector<1x1x128x128xbf16>
    %41 = vector.shape_cast %40 : vector<1x1x128x128xbf16> to vector<128x128xbf16>
    %cst_35 = arith.constant dense<0.000000e+00> : vector<16x128xf32>
    %42 = tpu.matmul %39, %41, %cst_35 {dimension_numbers = #tpu.dot_dimension_numbers<[1], [0], [0], [1], [0, 0, 1, 1], [], []>} : vector<16x128xbf16>, vector<128x128xbf16>, vector<16x128xf32> -> vector<16x128xf32>
    %43 = vector.extract_strided_slice %36 {offsets = [0, 0], sizes = [16, 128], strides = [1, 1]} : vector<32x128xbf16> to vector<16x128xbf16>
    %c1_36 = arith.constant 1 : index
    %c1_37 = arith.constant 1 : index
    %c0_38 = arith.constant 0 : index
    %c0_39 = arith.constant 0 : index
    %44 = vector.load %arg2[%c1_36, %c1_37, %c0_38, %c0_39] : memref<3x2x128x128xbf16, #tpu.memory_space<vmem>>, vector<1x1x128x128xbf16>
    %45 = vector.shape_cast %44 : vector<1x1x128x128xbf16> to vector<128x128xbf16>
    %cst_40 = arith.constant dense<0.000000e+00> : vector<16x128xf32>
    %46 = tpu.matmul %43, %45, %cst_40 {dimension_numbers = #tpu.dot_dimension_numbers<[1], [0], [0], [1], [0, 0, 1, 1], [], []>} : vector<16x128xbf16>, vector<128x128xbf16>, vector<16x128xf32> -> vector<16x128xf32>
    %47 = arith.addf %42, %46 : vector<16x128xf32>
    %c1_41 = arith.constant 1 : index
    %c0_42 = arith.constant 0 : index
    %c0_43 = arith.constant 0 : index
    %48 = vector.load %arg4[%c1_41, %c0_42, %c0_43] : memref<3x1x128xf32, #tpu.memory_space<vmem>>, vector<1x1x128xf32>
    %49 = vector.shape_cast %48 : vector<1x1x128xf32> to vector<1x128xf32>
    %50 = vector.broadcast %49 : vector<1x128xf32> to vector<16x128xf32>
    %51 = arith.addf %47, %50 : vector<16x128xf32>
    %52 = vector.extract_strided_slice %38 {offsets = [16, 0], sizes = [16, 128], strides = [1, 1]} : vector<32x128xbf16> to vector<16x128xbf16>
    %c1_44 = arith.constant 1 : index
    %c0_45 = arith.constant 0 : index
    %c0_46 = arith.constant 0 : index
    %c0_47 = arith.constant 0 : index
    %53 = vector.load %arg3[%c1_44, %c0_45, %c0_46, %c0_47] : memref<3x2x128x128xbf16, #tpu.memory_space<vmem>>, vector<1x1x128x128xbf16>
    %54 = vector.shape_cast %53 : vector<1x1x128x128xbf16> to vector<128x128xbf16>
    %cst_48 = arith.constant dense<0.000000e+00> : vector<16x128xf32>
    %55 = tpu.matmul %52, %54, %cst_48 {dimension_numbers = #tpu.dot_dimension_numbers<[1], [0], [0], [1], [0, 0, 1, 1], [], []>} : vector<16x128xbf16>, vector<128x128xbf16>, vector<16x128xf32> -> vector<16x128xf32>
    %56 = vector.extract_strided_slice %36 {offsets = [16, 0], sizes = [16, 128], strides = [1, 1]} : vector<32x128xbf16> to vector<16x128xbf16>
    %c1_49 = arith.constant 1 : index
    %c1_50 = arith.constant 1 : index
    %c0_51 = arith.constant 0 : index
    %c0_52 = arith.constant 0 : index
    %57 = vector.load %arg3[%c1_49, %c1_50, %c0_51, %c0_52] : memref<3x2x128x128xbf16, #tpu.memory_space<vmem>>, vector<1x1x128x128xbf16>
    %58 = vector.shape_cast %57 : vector<1x1x128x128xbf16> to vector<128x128xbf16>
    %cst_53 = arith.constant dense<0.000000e+00> : vector<16x128xf32>
    %59 = tpu.matmul %56, %58, %cst_53 {dimension_numbers = #tpu.dot_dimension_numbers<[1], [0], [0], [1], [0, 0, 1, 1], [], []>} : vector<16x128xbf16>, vector<128x128xbf16>, vector<16x128xf32> -> vector<16x128xf32>
    %60 = arith.addf %55, %59 : vector<16x128xf32>
    %c1_54 = arith.constant 1 : index
    %c0_55 = arith.constant 0 : index
    %c0_56 = arith.constant 0 : index
    %61 = vector.load %arg5[%c1_54, %c0_55, %c0_56] : memref<3x1x128xf32, #tpu.memory_space<vmem>>, vector<1x1x128xf32>
    %62 = vector.shape_cast %61 : vector<1x1x128xf32> to vector<1x128xf32>
    %63 = vector.broadcast %62 : vector<1x128xf32> to vector<16x128xf32>
    %64 = arith.addf %60, %63 : vector<16x128xf32>
    %cst_57 = arith.constant 0.000000e+00 : f32
    %65 = vector.broadcast %cst_57 : f32 to vector<16x128xf32>
    %66 = arith.maximumf %51, %65 : vector<16x128xf32>
    %cst_58 = arith.constant 0.000000e+00 : f32
    %67 = vector.broadcast %cst_58 : f32 to vector<16x128xf32>
    %68 = arith.maximumf %64, %67 : vector<16x128xf32>
    %69 = arith.truncf %66 : vector<16x128xf32> to vector<16x128xbf16>
    %70 = arith.truncf %68 : vector<16x128xf32> to vector<16x128xbf16>
    %71 = tpu.concatenate %69, %70 in 0 : vector<16x128xbf16>, vector<16x128xbf16> -> vector<32x128xbf16>
    %cst_59 = arith.constant dense<0.000000e+00> : vector<32x128xf32>
    %72 = tpu.matmul %0, %71, %cst_59 {dimension_numbers = #tpu.dot_dimension_numbers<[1], [0], [0], [1], [0, 0, 1, 1], [], []>} : vector<32x32xbf16>, vector<32x128xbf16>, vector<32x128xf32> -> vector<32x128xf32>
    %73 = arith.truncf %72 : vector<32x128xf32> to vector<32x128xbf16>
    %74 = vector.extract_strided_slice %73 {offsets = [0, 0], sizes = [16, 128], strides = [1, 1]} : vector<32x128xbf16> to vector<16x128xbf16>
    %c2 = arith.constant 2 : index
    %c0_60 = arith.constant 0 : index
    %c0_61 = arith.constant 0 : index
    %c0_62 = arith.constant 0 : index
    %75 = vector.load %arg2[%c2, %c0_60, %c0_61, %c0_62] : memref<3x2x128x128xbf16, #tpu.memory_space<vmem>>, vector<1x1x128x128xbf16>
    %76 = vector.shape_cast %75 : vector<1x1x128x128xbf16> to vector<128x128xbf16>
    %cst_63 = arith.constant dense<0.000000e+00> : vector<16x128xf32>
    %77 = tpu.matmul %74, %76, %cst_63 {dimension_numbers = #tpu.dot_dimension_numbers<[1], [0], [0], [1], [0, 0, 1, 1], [], []>} : vector<16x128xbf16>, vector<128x128xbf16>, vector<16x128xf32> -> vector<16x128xf32>
    %78 = vector.extract_strided_slice %71 {offsets = [0, 0], sizes = [16, 128], strides = [1, 1]} : vector<32x128xbf16> to vector<16x128xbf16>
    %c2_64 = arith.constant 2 : index
    %c1_65 = arith.constant 1 : index
    %c0_66 = arith.constant 0 : index
    %c0_67 = arith.constant 0 : index
    %79 = vector.load %arg2[%c2_64, %c1_65, %c0_66, %c0_67] : memref<3x2x128x128xbf16, #tpu.memory_space<vmem>>, vector<1x1x128x128xbf16>
    %80 = vector.shape_cast %79 : vector<1x1x128x128xbf16> to vector<128x128xbf16>
    %cst_68 = arith.constant dense<0.000000e+00> : vector<16x128xf32>
    %81 = tpu.matmul %78, %80, %cst_68 {dimension_numbers = #tpu.dot_dimension_numbers<[1], [0], [0], [1], [0, 0, 1, 1], [], []>} : vector<16x128xbf16>, vector<128x128xbf16>, vector<16x128xf32> -> vector<16x128xf32>
    %82 = arith.addf %77, %81 : vector<16x128xf32>
    %c2_69 = arith.constant 2 : index
    %c0_70 = arith.constant 0 : index
    %c0_71 = arith.constant 0 : index
    %83 = vector.load %arg4[%c2_69, %c0_70, %c0_71] : memref<3x1x128xf32, #tpu.memory_space<vmem>>, vector<1x1x128xf32>
    %84 = vector.shape_cast %83 : vector<1x1x128xf32> to vector<1x128xf32>
    %85 = vector.broadcast %84 : vector<1x128xf32> to vector<16x128xf32>
    %86 = arith.addf %82, %85 : vector<16x128xf32>
    %87 = vector.extract_strided_slice %73 {offsets = [16, 0], sizes = [16, 128], strides = [1, 1]} : vector<32x128xbf16> to vector<16x128xbf16>
    %c2_72 = arith.constant 2 : index
    %c0_73 = arith.constant 0 : index
    %c0_74 = arith.constant 0 : index
    %c0_75 = arith.constant 0 : index
    %88 = vector.load %arg3[%c2_72, %c0_73, %c0_74, %c0_75] : memref<3x2x128x128xbf16, #tpu.memory_space<vmem>>, vector<1x1x128x128xbf16>
    %89 = vector.shape_cast %88 : vector<1x1x128x128xbf16> to vector<128x128xbf16>
    %cst_76 = arith.constant dense<0.000000e+00> : vector<16x128xf32>
    %90 = tpu.matmul %87, %89, %cst_76 {dimension_numbers = #tpu.dot_dimension_numbers<[1], [0], [0], [1], [0, 0, 1, 1], [], []>} : vector<16x128xbf16>, vector<128x128xbf16>, vector<16x128xf32> -> vector<16x128xf32>
    %91 = vector.extract_strided_slice %71 {offsets = [16, 0], sizes = [16, 128], strides = [1, 1]} : vector<32x128xbf16> to vector<16x128xbf16>
    %c2_77 = arith.constant 2 : index
    %c1_78 = arith.constant 1 : index
    %c0_79 = arith.constant 0 : index
    %c0_80 = arith.constant 0 : index
    %92 = vector.load %arg3[%c2_77, %c1_78, %c0_79, %c0_80] : memref<3x2x128x128xbf16, #tpu.memory_space<vmem>>, vector<1x1x128x128xbf16>
    %93 = vector.shape_cast %92 : vector<1x1x128x128xbf16> to vector<128x128xbf16>
    %cst_81 = arith.constant dense<0.000000e+00> : vector<16x128xf32>
    %94 = tpu.matmul %91, %93, %cst_81 {dimension_numbers = #tpu.dot_dimension_numbers<[1], [0], [0], [1], [0, 0, 1, 1], [], []>} : vector<16x128xbf16>, vector<128x128xbf16>, vector<16x128xf32> -> vector<16x128xf32>
    %95 = arith.addf %90, %94 : vector<16x128xf32>
    %c2_82 = arith.constant 2 : index
    %c0_83 = arith.constant 0 : index
    %c0_84 = arith.constant 0 : index
    %96 = vector.load %arg5[%c2_82, %c0_83, %c0_84] : memref<3x1x128xf32, #tpu.memory_space<vmem>>, vector<1x1x128xf32>
    %97 = vector.shape_cast %96 : vector<1x1x128xf32> to vector<1x128xf32>
    %98 = vector.broadcast %97 : vector<1x128xf32> to vector<16x128xf32>
    %99 = arith.addf %95, %98 : vector<16x128xf32>
    %cst_85 = arith.constant 0.000000e+00 : f32
    %100 = vector.broadcast %cst_85 : f32 to vector<16x128xf32>
    %101 = arith.maximumf %86, %100 : vector<16x128xf32>
    %cst_86 = arith.constant 0.000000e+00 : f32
    %102 = vector.broadcast %cst_86 : f32 to vector<16x128xf32>
    %103 = arith.maximumf %99, %102 : vector<16x128xf32>
    %104 = vector.extract_strided_slice %101 {offsets = [0, 0], sizes = [8, 128], strides = [1, 1]} : vector<16x128xf32> to vector<8x128xf32>
    %c0_87 = arith.constant 0 : index
    %c0_88 = arith.constant 0 : index
    %105 = vector.load %arg6[%c0_87, %c0_88] : memref<8x128xf32, #tpu.memory_space<vmem>>, vector<8x128xf32>
    tpu.vector_store %arg6[%c0_87, %c0_88], %104 {strides = array<i32>} : memref<8x128xf32, #tpu.memory_space<vmem>>, vector<8x128xf32>,
    %c0_89 = arith.constant 0 : index
    %c0_90 = arith.constant 0 : index
    %106 = vector.load %arg7[%c0_89, %c0_90] : memref<16x128xf32, #tpu.memory_space<vmem>>, vector<16x128xf32>
    tpu.vector_store %arg7[%c0_89, %c0_90], %103 {strides = array<i32>} : memref<16x128xf32, #tpu.memory_space<vmem>>, vector<16x128xf32>,
    return
  }
}

</mosaic_0001>

<llo_original>
// kernel: hgcn_forward.1
$region0: #{hgcn_forward.1}
  #allocation0 [shape = 'u32[]', space=smem, size = 0x4, offset = 0x4, fixed_abs, tag = 'smem constant byte address 0x4 - core index']
  #allocation1 [shape = 'u32[72,128]{1,0:T(1,128)}', space=vmem, size = 0x9000, scoped, tag = 'internal scratch']
  %s0 = inlined_call_operand.hbm [shape: bf16[32,32], index: 0, kind: input, shape index: {}]
  %s1 = inlined_call_operand.hbm [shape: bf16[32,128], index: 1, kind: input, shape index: {}]
  %s2 = inlined_call_operand.hbm [shape: bf16[3,2,128,128], index: 2, kind: input, shape index: {}]
  %s3 = inlined_call_operand.hbm [shape: bf16[3,2,128,128], index: 3, kind: input, shape index: {}]
  %s4 = inlined_call_operand.vmem [shape: f32[3,1,128], index: 4, kind: input, shape index: {}]
  %s5 = inlined_call_operand.hbm [shape: f32[3,1,128], index: 5, kind: input, shape index: {}]
  %s6 = inlined_call_operand.hbm [shape: f32[8,128], index: 6, kind: output, shape index: {0}]
  %s7 = inlined_call_operand.hbm [shape: f32[16,128], index: 7, kind: output, shape index: {1}]
  %8 = xla_tuple %s6, %s7
  %s9 = sld [smem:[#allocation0]]
  $region62: #{hgcn_forward.1} parent=0
    _
  %s11 = ssub.s32 1, %s9
  %s12 = scalar_select 0, %s11, %s9
  $region1: #{hgcn_forward.1} parent=0
    #allocation2 [shape = 'u8[8192]{0}', space=vmem, size = 0x2000, scoped, tag = 'input window, operand 0, single buffered']
    #allocation3 [shape = 's32[1]{0}', space=sflag, size = 0x4, scoped, tag = 'scoped memory for hgcn_forward.1']
    #allocation4 [shape = 's32[1]{0}', space=sflag, size = 0x4, scoped, tag = 'scoped memory for hgcn_forward.1']
    #allocation5 [shape = 'u8[8192]{0}', space=vmem, size = 0x2000, scoped, tag = 'input window, operand 1, single buffered']
    #allocation6 [shape = 's32[1]{0}', space=sflag, size = 0x4, scoped, tag = 'scoped memory for hgcn_forward.1']
    #allocation7 [shape = 'u8[196608]{0}', space=vmem, size = 0x30000, scoped, tag = 'input window, operand 2, single buffered']
    #allocation8 [shape = 'u8[196608]{0}', space=vmem, size = 0x30000, scoped, tag = 'input window, operand 3, single buffered']
    #allocation9 [shape = 's32[1]{0}', space=sflag, size = 0x4, scoped, tag = 'scoped memory for hgcn_forward.1']
    #allocation10 [shape = 'u8[1536]{0}', space=vmem, size = 0x800, scoped, tag = 'input window, operand 5, single buffered']
    #allocation11 [shape = 'u8[4096]{0}', space=vmem, size = 0x1000, scoped, tag = 'output window, operand 0, single buffered']
    #allocation12 [shape = 'u8[8192]{0}', space=vmem, size = 0x2000, scoped, tag = 'output window, operand 1, single buffered']
    #allocation13 [shape = 's32[1]{0}', space=sflag, size = 0x4, scoped, tag = 'scoped memory for hgcn_forward.1']
    %13 = vsyncpa [#allocation3], 0
    %14 = vsyncpa [#allocation6], 0
    %15 = vsyncpa [#allocation9], 0
    %16 = vsyncpa [#allocation4], 0
    %17 = vsyncpa [#allocation13], 0
    // Predicated region
    $region2: #{hgcn_forward.1} parent=1 // pred_check
      _
    $region3: #{hgcn_forward.1} parent=1 // pred_check_branch
      %19 = sbr.rel (0) target = $region5
    $region4: #{hgcn_forward.1} parent=1 // pred_region
      %21 = vsyncadd [#allocation3], 0
      %s22 = sshll.u32 %s0, 4
      %s23 = int_to_ptr.hbm [resolvable:$true] %s22
      %s24 = sshll.u32 [#allocation2], 4
      %s25 = int_to_ptr.vmem [resolvable:$true] %s24
      %30 = dma.hbm_to_vmem [thread:$0]  %s23, 256, %s25, [#allocation3], 64, 64, 4
    $region5: #{hgcn_forward.1} parent=1 // pred_fallthru
      _
    // Predicated region
    $region6: #{hgcn_forward.1} parent=1 // pred_check
      _
    $region7: #{hgcn_forward.1} parent=1 // pred_check_branch
      %32 = sbr.rel (0) target = $region9
    $region8: #{hgcn_forward.1} parent=1 // pred_region
      %34 = vsyncadd [#allocation6], 0
      %s35 = sshll.u32 %s1, 4
      %s36 = int_to_ptr.hbm [resolvable:$true] %s35
      %s37 = sshll.u32 [#allocation5], 4
      %s38 = int_to_ptr.vmem [resolvable:$true] %s37
      %43 = dma.hbm_to_vmem [thread:$0]  %s36, 256, %s38, [#allocation6], 64, 64, 4
    $region9: #{hgcn_forward.1} parent=1 // pred_fallthru
      _
    // Predicated region
    $region10: #{hgcn_forward.1} parent=1 // pred_check
      _
    $region11: #{hgcn_forward.1} parent=1 // pred_check_branch
      %45 = sbr.rel (0) target = $region13
    $region12: #{hgcn_forward.1} parent=1 // pred_region
      %47 = vsyncadd [#allocation6], 0
      %s48 = sshll.u32 %s2, 4
      %s49 = int_to_ptr.hbm [resolvable:$true] %s48
      %s50 = sshll.u32 [#allocation7], 4
      %s51 = int_to_ptr.vmem [resolvable:$true] %s50
      %56 = dma.hbm_to_vmem [thread:$0]  %s49, 6144, %s51, [#allocation6], 64, 64, 4
    $region13: #{hgcn_forward.1} parent=1 // pred_fallthru
      _
    // Predicated region
    $region14: #{hgcn_forward.1} parent=1 // pred_check
      _
    $region15: #{hgcn_forward.1} parent=1 // pred_check_branch
      %58 = sbr.rel (0) target = $region17
    $region16: #{hgcn_forward.1} parent=1 // pred_region
      %60 = vsyncadd [#allocation9], 0
      %s61 = sshll.u32 %s3, 4
      %s62 = int_to_ptr.hbm [resolvable:$true] %s61
      %s63 = sshll.u32 [#allocation8], 4
      %s64 = int_to_ptr.vmem [resolvable:$true] %s63
      %69 = dma.hbm_to_vmem [thread:$0]  %s62, 6144, %s64, [#allocation9], 64, 64, 4
    $region17: #{hgcn_forward.1} parent=1 // pred_fallthru
      _
    // Predicated region
    $region18: #{hgcn_forward.1} parent=1 // pred_check
      _
    $region19: #{hgcn_forward.1} parent=1 // pred_check_branch
      %71 = sbr.rel (0) target = $region21
    $region20: #{hgcn_forward.1} parent=1 // pred_region
      _
    $region21: #{hgcn_forward.1} parent=1 // pred_fallthru
      _
    // Predicated region
    $region22: #{hgcn_forward.1} parent=1 // pred_check
      _
    $region23: #{hgcn_forward.1} parent=1 // pred_check_branch
      %73 = sbr.rel (0) target = $region25
    $region24: #{hgcn_forward.1} parent=1 // pred_region
      %75 = vsyncadd [#allocation9], 0
      %s76 = sshll.u32 %s5, 4
      %s77 = int_to_ptr.hbm [resolvable:$true] %s76
      %s78 = sshll.u32 [#allocation10], 4
      %s79 = int_to_ptr.vmem [resolvable:$true] %s78
      %84 = dma.hbm_to_vmem [thread:$0]  %s77, 48, %s79, [#allocation9], 16, 16, 1
    $region25: #{hgcn_forward.1} parent=1 // pred_fallthru
      _
    // Predicated region
    $region26: #{hgcn_forward.1} parent=1 // pred_check
      _
    $region27: #{hgcn_forward.1} parent=1 // pred_check_branch
      %86 = sbr.rel (0) target = $region29
    $region28: #{hgcn_forward.1} parent=1 // pred_region
      %88 = dma.done [#allocation3], 256
    $region29: #{hgcn_forward.1} parent=1 // pred_fallthru
      _
    // Predicated region
    $region30: #{hgcn_forward.1} parent=1 // pred_check
      _
    $region31: #{hgcn_forward.1} parent=1 // pred_check_branch
      %90 = sbr.rel (0) target = $region33
    $region32: #{hgcn_forward.1} parent=1 // pred_region
      %92 = dma.done [#allocation6], 256
    $region33: #{hgcn_forward.1} parent=1 // pred_fallthru
      _
    // Predicated region
    $region34: #{hgcn_forward.1} parent=1 // pred_check
      _
    $region35: #{hgcn_forward.1} parent=1 // pred_check_branch
      %94 = sbr.rel (0) target = $region37
    $region36: #{hgcn_forward.1} parent=1 // pred_region
      %96 = dma.done [#allocation6], 6144
    $region37: #{hgcn_forward.1} parent=1 // pred_fallthru
      _
    // Predicated region
    $region38: #{hgcn_forward.1} parent=1 // pred_check
      _
    $region39: #{hgcn_forward.1} parent=1 // pred_check_branch
      %98 = sbr.rel (0) target = $region41
    $region40: #{hgcn_forward.1} parent=1 // pred_region
      %100 = dma.done [#allocation9], 6144
    $region41: #{hgcn_forward.1} parent=1 // pred_fallthru
      _
    // Predicated region
    $region42: #{hgcn_forward.1} parent=1 // pred_check
      _
    $region43: #{hgcn_forward.1} parent=1 // pred_check_branch
      %102 = sbr.rel (0) target = $region45
    $region44: #{hgcn_forward.1} parent=1 // pred_region
      %104 = dma.done [#allocation9], 48
    $region45: #{hgcn_forward.1} parent=1 // pred_fallthru
      _
    %v106 = vld [vmem:[#allocation2] sm:$0xf]
    %v107 = vld [vmem:[#allocation2 + $0x4] sm:$0xf]
    %v108 = vld [vmem:[#allocation2 + $0x8] sm:$0xf]
    %v109 = vld [vmem:[#allocation2 + $0xc] sm:$0xf]
    %v110 = vld [vmem:[#allocation5] sm:$0xf]
    %v111 = vld [vmem:[#allocation5 + $0x4] sm:$0xf]
    %v112 = vld [vmem:[#allocation5 + $0x8] sm:$0xf]
    %v113 = vld [vmem:[#allocation5 + $0xc] sm:$0xf]
    %v118 = vunpack.c.l.b16 %v106
    %v119 = vunpack.c.l.b16 %v107
    %v120 = vunpack.c.l.b16 %v108
    %v121 = vunpack.c.l.b16 %v109
    %v122 = vpack.c.b16 %v119, %v118
    %v123 = vpack.c.b16 %v121, %v120
    %v128 = vunpack.c.l.b16 %v110
    %v129 = vunpack.c.l.b16 %v111
    %v130 = vunpack.c.l.b16 %v112
    %v131 = vunpack.c.l.b16 %v113
    %v132 = vpack.c.b16 %v129, %v128
    %v133 = vpack.c.b16 %v131, %v130
    %vm136 = vcmask 261120
    %v138 = vsel %vm136, %v122, 0
    %v141 = vsel %vm136, %v123, 0
    %143 = vmatpush.bf16.msra.mxu0 0
    %144 = vmatpush.bf16.msra.mxu0 0
    %145 = vmatpush.bf16.msra.mxu0 0
    %146 = vmatpush.bf16.msra.mxu0 0
    %147 = vmatpush.bf16.msra.mxu0 0
    %148 = vmatpush.bf16.msra.mxu0 0
    %149 = vmatpush.bf16.msra.mxu0 %v133
    %150 = vmatpush.bf16.msra.mxu0 %v132
    %151 = vmatmul.bf16.gmra.mxu0 %v138
    %v152 = vpop.f32.mrf.mxu0
    %v153 = vadd.f32 0.0, %v152
    %v154 = vpop.f32.mrf.mxu0
    %v155 = vadd.f32 0.0, %v154
    %156 = vmatmul.bf16.gmra.mxu0 %v141
    %v157 = vpop.f32.mrf.mxu0
    %v158 = vadd.f32 0.0, %v157
    %v159 = vpop.f32.mrf.mxu0
    %v160 = vadd.f32 0.0, %v159
    %161 = vdwg.mxu0
    %v162 = vpack.c.bf16 %v153, %v153
    %v163 = vpack.c.bf16 %v155, %v155
    %v164 = vpack.c.bf16 %v158, %v158
    %v165 = vpack.c.bf16 %v160, %v160
    %v166 = vld [vmem:[#allocation7] sm:$0xf]
    %v167 = vld [vmem:[#allocation7 + $0x4] sm:$0xf]
    %v168 = vld [vmem:[#allocation7 + $0x8] sm:$0xf]
    %v169 = vld [vmem:[#allocation7 + $0xc] sm:$0xf]
    %v170 = vld [vmem:[#allocation7 + $0x10] sm:$0xf]
    %v171 = vld [vmem:[#allocation7 + $0x14] sm:$0xf]
    %v172 = vld [vmem:[#allocation7 + $0x18] sm:$0xf]
    %v173 = vld [vmem:[#allocation7 + $0x1c] sm:$0xf]
    %v174 = vld [vmem:[#allocation7 + $0x20] sm:$0xf]
    %v175 = vld [vmem:[#allocation7 + $0x24] sm:$0xf]
    %v176 = vld [vmem:[#allocation7 + $0x28] sm:$0xf]
    %v177 = vld [vmem:[#allocation7 + $0x2c] sm:$0xf]
    %v178 = vld [vmem:[#allocation7 + $0x30] sm:$0xf]
    %v179 = vld [vmem:[#allocation7 + $0x34] sm:$0xf]
    %v180 = vld [vmem:[#allocation7 + $0x38] sm:$0xf]
    %v181 = vld [vmem:[#allocation7 + $0x3c] sm:$0xf]
    %s182 = scalar_lea.vmem [#allocation7], 64
    %v183 = vld [vmem:[%s182] sm:$0xf]
    %v184 = vld [vmem:[%s182 + $0x4] sm:$0xf]
    %v185 = vld [vmem:[%s182 + $0x8] sm:$0xf]
    %v186 = vld [vmem:[%s182 + $0xc] sm:$0xf]
    %v187 = vld [vmem:[%s182 + $0x10] sm:$0xf]
    %v188 = vld [vmem:[%s182 + $0x14] sm:$0xf]
    %v189 = vld [vmem:[%s182 + $0x18] sm:$0xf]
    %v190 = vld [vmem:[%s182 + $0x1c] sm:$0xf]
    %v191 = vld [vmem:[%s182 + $0x20] sm:$0xf]
    %v192 = vld [vmem:[%s182 + $0x24] sm:$0xf]
    %v193 = vld [vmem:[%s182 + $0x28] sm:$0xf]
    %v194 = vld [vmem:[%s182 + $0x2c] sm:$0xf]
    %v195 = vld [vmem:[%s182 + $0x30] sm:$0xf]
    %v196 = vld [vmem:[%s182 + $0x34] sm:$0xf]
    %v197 = vld [vmem:[%s182 + $0x38] sm:$0xf]
    %v198 = vld [vmem:[%s182 + $0x3c] sm:$0xf]
    %v215 = vunpack.c.l.b16 %v183
    %v216 = vunpack.c.l.b16 %v184
    %v217 = vunpack.c.l.b16 %v185
    %v218 = vunpack.c.l.b16 %v186
    %v219 = vunpack.c.l.b16 %v187
    %v220 = vunpack.c.l.b16 %v188
    %v221 = vunpack.c.l.b16 %v189
    %v222 = vunpack.c.l.b16 %v190
    %v223 = vunpack.c.l.b16 %v191
    %v224 = vunpack.c.l.b16 %v192
    %v225 = vunpack.c.l.b16 %v193
    %v226 = vunpack.c.l.b16 %v194
    %v227 = vunpack.c.l.b16 %v195
    %v228 = vunpack.c.l.b16 %v196
    %v229 = vunpack.c.l.b16 %v197
    %v230 = vunpack.c.l.b16 %v198
    %v231 = vpack.c.b16 %v216, %v215
    %v232 = vpack.c.b16 %v218, %v217
    %v233 = vpack.c.b16 %v220, %v219
    %v234 = vpack.c.b16 %v222, %v221
    %v235 = vpack.c.b16 %v224, %v223
    %v236 = vpack.c.b16 %v226, %v225
    %v237 = vpack.c.b16 %v228, %v227
    %v238 = vpack.c.b16 %v230, %v229
    %247 = vmatpush.bf16.msra.mxu0 %v238
    %248 = vmatpush.bf16.msra.mxu0 %v237
    %249 = vmatpush.bf16.msra.mxu0 %v236
    %250 = vmatpush.bf16.msra.mxu0 %v235
    %251 = vmatpush.bf16.msra.mxu0 %v234
    %252 = vmatpush.bf16.msra.mxu0 %v233
    %253 = vmatpush.bf16.msra.mxu0 %v232
    %254 = vmatpush.bf16.msra.mxu0 %v231
    %255 = vmatmul.bf16.gmra.mxu0 %v132
    %v256 = vpop.f32.mrf.mxu0
    %v257 = vadd.f32 0.0, %v256
    %v258 = vpop.f32.mrf.mxu0
    %v259 = vadd.f32 0.0, %v258
    %260 = vdwg.mxu0
    %v263 = vunpack.c.l.b16 %v162
    %v264 = vunpack.c.l.b16 %v163
    %v265 = vpack.c.b16 %v264, %v263
    %v283 = vunpack.c.l.b16 %v166
    %v284 = vunpack.c.l.b16 %v167
    %v285 = vunpack.c.l.b16 %v168
    %v286 = vunpack.c.l.b16 %v169
    %v287 = vunpack.c.l.b16 %v170
    %v288 = vunpack.c.l.b16 %v171
    %v289 = vunpack.c.l.b16 %v172
    %v290 = vunpack.c.l.b16 %v173
    %v291 = vunpack.c.l.b16 %v174
    %v292 = vunpack.c.l.b16 %v175
    %v293 = vunpack.c.l.b16 %v176
    %v294 = vunpack.c.l.b16 %v177
    %v295 = vunpack.c.l.b16 %v178
    %v296 = vunpack.c.l.b16 %v179
    %v297 = vunpack.c.l.b16 %v180
    %v298 = vunpack.c.l.b16 %v181
    %v299 = vpack.c.b16 %v284, %v283
    %v300 = vpack.c.b16 %v286, %v285
    %v301 = vpack.c.b16 %v288, %v287
    %v302 = vpack.c.b16 %v290, %v289
    %v303 = vpack.c.b16 %v292, %v291
    %v304 = vpack.c.b16 %v294, %v293
    %v305 = vpack.c.b16 %v296, %v295
    %v306 = vpack.c.b16 %v298, %v297
    %315 = vmatpush.bf16.msra.mxu0 %v306
    %316 = vmatpush.bf16.msra.mxu0 %v305
    %317 = vmatpush.bf16.msra.mxu0 %v304
    %318 = vmatpush.bf16.msra.mxu0 %v303
    %319 = vmatpush.bf16.msra.mxu0 %v302
    %320 = vmatpush.bf16.msra.mxu0 %v301
    %321 = vmatpush.bf16.msra.mxu0 %v300
    %322 = vmatpush.bf16.msra.mxu0 %v299
    %323 = vmatmul.bf16.gmra.mxu0 %v265
    %v324 = vpop.f32.mrf.mxu0
    %v325 = vadd.f32 %v257, %v324
    %v326 = vpop.f32.mrf.mxu0
    %v327 = vadd.f32 %v259, %v326
    %328 = vdwg.mxu0
    %v329 = vld [vmem:[%s4] sm:$0x1]
    %v331 = vperm.slane %v329, 0
    %v333 = vadd.f32 %v325, %v331
    %v334 = vadd.f32 %v327, %v331
    %v335 = vld [vmem:[#allocation8] sm:$0xf]
    %v336 = vld [vmem:[#allocation8 + $0x4] sm:$0xf]
    %v337 = vld [vmem:[#allocation8 + $0x8] sm:$0xf]
    %v338 = vld [vmem:[#allocation8 + $0xc] sm:$0xf]
    %v339 = vld [vmem:[#allocation8 + $0x10] sm:$0xf]
    %v340 = vld [vmem:[#allocation8 + $0x14] sm:$0xf]
    %v341 = vld [vmem:[#allocation8 + $0x18] sm:$0xf]
    %v342 = vld [vmem:[#allocation8 + $0x1c] sm:$0xf]
    %v343 = vld [vmem:[#allocation8 + $0x20] sm:$0xf]
    %v344 = vld [vmem:[#allocation8 + $0x24] sm:$0xf]
    %v345 = vld [vmem:[#allocation8 + $0x28] sm:$0xf]
    %v346 = vld [vmem:[#allocation8 + $0x2c] sm:$0xf]
    %v347 = vld [vmem:[#allocation8 + $0x30] sm:$0xf]
    %v348 = vld [vmem:[#allocation8 + $0x34] sm:$0xf]
    %v349 = vld [vmem:[#allocation8 + $0x38] sm:$0xf]
    %v350 = vld [vmem:[#allocation8 + $0x3c] sm:$0xf]
    %s351 = scalar_lea.vmem [#allocation8], 64
    %v352 = vld [vmem:[%s351] sm:$0xf]
    %v353 = vld [vmem:[%s351 + $0x4] sm:$0xf]
    %v354 = vld [vmem:[%s351 + $0x8] sm:$0xf]
    %v355 = vld [vmem:[%s351 + $0xc] sm:$0xf]
    %v356 = vld [vmem:[%s351 + $0x10] sm:$0xf]
    %v357 = vld [vmem:[%s351 + $0x14] sm:$0xf]
    %v358 = vld [vmem:[%s351 + $0x18] sm:$0xf]
    %v359 = vld [vmem:[%s351 + $0x1c] sm:$0xf]
    %v360 = vld [vmem:[%s351 + $0x20] sm:$0xf]
    %v361 = vld [vmem:[%s351 + $0x24] sm:$0xf]
    %v362 = vld [vmem:[%s351 + $0x28] sm:$0xf]
    %v363 = vld [vmem:[%s351 + $0x2c] sm:$0xf]
    %v364 = vld [vmem:[%s351 + $0x30] sm:$0xf]
    %v365 = vld [vmem:[%s351 + $0x34] sm:$0xf]
    %v366 = vld [vmem:[%s351 + $0x38] sm:$0xf]
    %v367 = vld [vmem:[%s351 + $0x3c] sm:$0xf]
    %v384 = vunpack.c.l.b16 %v352
    %v385 = vunpack.c.l.b16 %v353
    %v386 = vunpack.c.l.b16 %v354
    %v387 = vunpack.c.l.b16 %v355
    %v388 = vunpack.c.l.b16 %v356
    %v389 = vunpack.c.l.b16 %v357
    %v390 = vunpack.c.l.b16 %v358
    %v391 = vunpack.c.l.b16 %v359
    %v392 = vunpack.c.l.b16 %v360
    %v393 = vunpack.c.l.b16 %v361
    %v394 = vunpack.c.l.b16 %v362
    %v395 = vunpack.c.l.b16 %v363
    %v396 = vunpack.c.l.b16 %v364
    %v397 = vunpack.c.l.b16 %v365
    %v398 = vunpack.c.l.b16 %v366
    %v399 = vunpack.c.l.b16 %v367
    %v400 = vpack.c.b16 %v385, %v384
    %v401 = vpack.c.b16 %v387, %v386
    %v402 = vpack.c.b16 %v389, %v388
    %v403 = vpack.c.b16 %v391, %v390
    %v404 = vpack.c.b16 %v393, %v392
    %v405 = vpack.c.b16 %v395, %v394
    %v406 = vpack.c.b16 %v397, %v396
    %v407 = vpack.c.b16 %v399, %v398
    %416 = vmatpush.bf16.msra.mxu0 %v407
    %417 = vmatpush.bf16.msra.mxu0 %v406
    %418 = vmatpush.bf16.msra.mxu0 %v405
    %419 = vmatpush.bf16.msra.mxu0 %v404
    %420 = vmatpush.bf16.msra.mxu0 %v403
    %421 = vmatpush.bf16.msra.mxu0 %v402
    %422 = vmatpush.bf16.msra.mxu0 %v401
    %423 = vmatpush.bf16.msra.mxu0 %v400
    %424 = vmatmul.bf16.gmra.mxu0 %v133
    %v425 = vpop.f32.mrf.mxu0
    %v426 = vadd.f32 0.0, %v425
    %v427 = vpop.f32.mrf.mxu0
    %v428 = vadd.f32 0.0, %v427
    %429 = vdwg.mxu0
    %v432 = vunpack.c.l.b16 %v164
    %v433 = vunpack.c.l.b16 %v165
    %v434 = vpack.c.b16 %v433, %v432
    %v452 = vunpack.c.l.b16 %v335
    %v453 = vunpack.c.l.b16 %v336
    %v454 = vunpack.c.l.b16 %v337
    %v455 = vunpack.c.l.b16 %v338
    %v456 = vunpack.c.l.b16 %v339
    %v457 = vunpack.c.l.b16 %v340
    %v458 = vunpack.c.l.b16 %v341
    %v459 = vunpack.c.l.b16 %v342
    %v460 = vunpack.c.l.b16 %v343
    %v461 = vunpack.c.l.b16 %v344
    %v462 = vunpack.c.l.b16 %v345
    %v463 = vunpack.c.l.b16 %v346
    %v464 = vunpack.c.l.b16 %v347
    %v465 = vunpack.c.l.b16 %v348
    %v466 = vunpack.c.l.b16 %v349
    %v467 = vunpack.c.l.b16 %v350
    %v468 = vpack.c.b16 %v453, %v452
    %v469 = vpack.c.b16 %v455, %v454
    %v470 = vpack.c.b16 %v457, %v456
    %v471 = vpack.c.b16 %v459, %v458
    %v472 = vpack.c.b16 %v461, %v460
    %v473 = vpack.c.b16 %v463, %v462
    %v474 = vpack.c.b16 %v465, %v464
    %v475 = vpack.c.b16 %v467, %v466
    %484 = vmatpush.bf16.msra.mxu0 %v475
    %485 = vmatpush.bf16.msra.mxu0 %v474
    %486 = vmatpush.bf16.msra.mxu0 %v473
    %487 = vmatpush.bf16.msra.mxu0 %v472
    %488 = vmatpush.bf16.msra.mxu0 %v471
    %489 = vmatpush.bf16.msra.mxu0 %v470
    %490 = vmatpush.bf16.msra.mxu0 %v469
    %491 = vmatpush.bf16.msra.mxu0 %v468
    %492 = vmatmul.bf16.gmra.mxu0 %v434
    %v493 = vpop.f32.mrf.mxu0
    %v494 = vadd.f32 %v426, %v493
    %v495 = vpop.f32.mrf.mxu0
    %v496 = vadd.f32 %v428, %v495
    %497 = vdwg.mxu0
    %v498 = vld [vmem:[#allocation10] sm:$0x1]
    %v500 = vperm.slane %v498, 0
    %v502 = vadd.f32 %v494, %v500
    %v503 = vadd.f32 %v496, %v500
    %v504 = vmax.f32 %v333, 0.0
    %v505 = vmax.f32 %v334, 0.0
    %v506 = vmax.f32 %v502, 0.0
    %v507 = vmax.f32 %v503, 0.0
    %v508 = vpack.c.bf16 %v504, %v504
    %v509 = vpack.c.bf16 %v505, %v505
    %v510 = vpack.c.bf16 %v506, %v506
    %v511 = vpack.c.bf16 %v507, %v507
    %v514 = vunpack.c.l.b16 %v508
    %v515 = vunpack.c.l.b16 %v509
    %v516 = vpack.c.b16 %v515, %v514
    %v520 = vunpack.c.l.b16 %v510
    %v521 = vunpack.c.l.b16 %v511
    %v522 = vpack.c.b16 %v521, %v520
    %524 = vmatpush.bf16.msra.mxu0 0
    %525 = vmatpush.bf16.msra.mxu0 0
    %526 = vmatpush.bf16.msra.mxu0 0
    %527 = vmatpush.bf16.msra.mxu0 0
    %528 = vmatpush.bf16.msra.mxu0 0
    %529 = vmatpush.bf16.msra.mxu0 0
    %530 = vmatpush.bf16.msra.mxu0 %v522
    %531 = vmatpush.bf16.msra.mxu0 %v516
    %532 = vmatmul.bf16.gmra.mxu0 %v138
    %v533 = vpop.f32.mrf.mxu0
    %v534 = vadd.f32 0.0, %v533
    %v535 = vpop.f32.mrf.mxu0
    %v536 = vadd.f32 0.0, %v535
    %537 = vmatmul.bf16.gmra.mxu0 %v141
    %v538 = vpop.f32.mrf.mxu0
    %v539 = vadd.f32 0.0, %v538
    %v540 = vpop.f32.mrf.mxu0
    %v541 = vadd.f32 0.0, %v540
    %542 = vdwg.mxu0
    %v543 = vpack.c.bf16 %v534, %v534
    %v544 = vpack.c.bf16 %v536, %v536
    %v545 = vpack.c.bf16 %v539, %v539
    %v546 = vpack.c.bf16 %v541, %v541
    %s547 = scalar_lea.vmem [#allocation7], 128
    %v548 = vld [vmem:[%s547] sm:$0xf]
    %v549 = vld [vmem:[%s547 + $0x4] sm:$0xf]
    %v550 = vld [vmem:[%s547 + $0x8] sm:$0xf]
    %v551 = vld [vmem:[%s547 + $0xc] sm:$0xf]
    %v552 = vld [vmem:[%s547 + $0x10] sm:$0xf]
    %v553 = vld [vmem:[%s547 + $0x14] sm:$0xf]
    %v554 = vld [vmem:[%s547 + $0x18] sm:$0xf]
    %v555 = vld [vmem:[%s547 + $0x1c] sm:$0xf]
    %v556 = vld [vmem:[%s547 + $0x20] sm:$0xf]
    %v557 = vld [vmem:[%s547 + $0x24] sm:$0xf]
    %v558 = vld [vmem:[%s547 + $0x28] sm:$0xf]
    %v559 = vld [vmem:[%s547 + $0x2c] sm:$0xf]
    %v560 = vld [vmem:[%s547 + $0x30] sm:$0xf]
    %v561 = vld [vmem:[%s547 + $0x34] sm:$0xf]
    %v562 = vld [vmem:[%s547 + $0x38] sm:$0xf]
    %v563 = vld [vmem:[%s547 + $0x3c] sm:$0xf]
    %s564 = scalar_lea.vmem [#allocation7], 192
    %v565 = vld [vmem:[%s564] sm:$0xf]
    %v566 = vld [vmem:[%s564 + $0x4] sm:$0xf]
    %v567 = vld [vmem:[%s564 + $0x8] sm:$0xf]
    %v568 = vld [vmem:[%s564 + $0xc] sm:$0xf]
    %v569 = vld [vmem:[%s564 + $0x10] sm:$0xf]
    %v570 = vld [vmem:[%s564 + $0x14] sm:$0xf]
    %v571 = vld [vmem:[%s564 + $0x18] sm:$0xf]
    %v572 = vld [vmem:[%s564 + $0x1c] sm:$0xf]
    %v573 = vld [vmem:[%s564 + $0x20] sm:$0xf]
    %v574 = vld [vmem:[%s564 + $0x24] sm:$0xf]
    %v575 = vld [vmem:[%s564 + $0x28] sm:$0xf]
    %v576 = vld [vmem:[%s564 + $0x2c] sm:$0xf]
    %v577 = vld [vmem:[%s564 + $0x30] sm:$0xf]
    %v578 = vld [vmem:[%s564 + $0x34] sm:$0xf]
    %v579 = vld [vmem:[%s564 + $0x38] sm:$0xf]
    %v580 = vld [vmem:[%s564 + $0x3c] sm:$0xf]
    %v597 = vunpack.c.l.b16 %v565
    %v598 = vunpack.c.l.b16 %v566
    %v599 = vunpack.c.l.b16 %v567
    %v600 = vunpack.c.l.b16 %v568
    %v601 = vunpack.c.l.b16 %v569
    %v602 = vunpack.c.l.b16 %v570
    %v603 = vunpack.c.l.b16 %v571
    %v604 = vunpack.c.l.b16 %v572
    %v605 = vunpack.c.l.b16 %v573
    %v606 = vunpack.c.l.b16 %v574
    %v607 = vunpack.c.l.b16 %v575
    %v608 = vunpack.c.l.b16 %v576
    %v609 = vunpack.c.l.b16 %v577
    %v610 = vunpack.c.l.b16 %v578
    %v611 = vunpack.c.l.b16 %v579
    %v612 = vunpack.c.l.b16 %v580
    %v613 = vpack.c.b16 %v598, %v597
    %v614 = vpack.c.b16 %v600, %v599
    %v615 = vpack.c.b16 %v602, %v601
    %v616 = vpack.c.b16 %v604, %v603
    %v617 = vpack.c.b16 %v606, %v605
    %v618 = vpack.c.b16 %v608, %v607
    %v619 = vpack.c.b16 %v610, %v609
    %v620 = vpack.c.b16 %v612, %v611
    %629 = vmatpush.bf16.msra.mxu0 %v620
    %630 = vmatpush.bf16.msra.mxu0 %v619
    %631 = vmatpush.bf16.msra.mxu0 %v618
    %632 = vmatpush.bf16.msra.mxu0 %v617
    %633 = vmatpush.bf16.msra.mxu0 %v616
    %634 = vmatpush.bf16.msra.mxu0 %v615
    %635 = vmatpush.bf16.msra.mxu0 %v614
    %636 = vmatpush.bf16.msra.mxu0 %v613
    %637 = vmatmul.bf16.gmra.mxu0 %v516
    %v638 = vpop.f32.mrf.mxu0
    %v639 = vadd.f32 0.0, %v638
    %v640 = vpop.f32.mrf.mxu0
    %v641 = vadd.f32 0.0, %v640
    %642 = vdwg.mxu0
    %v645 = vunpack.c.l.b16 %v543
    %v646 = vunpack.c.l.b16 %v544
    %v647 = vpack.c.b16 %v646, %v645
    %v665 = vunpack.c.l.b16 %v548
    %v666 = vunpack.c.l.b16 %v549
    %v667 = vunpack.c.l.b16 %v550
    %v668 = vunpack.c.l.b16 %v551
    %v669 = vunpack.c.l.b16 %v552
    %v670 = vunpack.c.l.b16 %v553
    %v671 = vunpack.c.l.b16 %v554
    %v672 = vunpack.c.l.b16 %v555
    %v673 = vunpack.c.l.b16 %v556
    %v674 = vunpack.c.l.b16 %v557
    %v675 = vunpack.c.l.b16 %v558
    %v676 = vunpack.c.l.b16 %v559
    %v677 = vunpack.c.l.b16 %v560
    %v678 = vunpack.c.l.b16 %v561
    %v679 = vunpack.c.l.b16 %v562
    %v680 = vunpack.c.l.b16 %v563
    %v681 = vpack.c.b16 %v666, %v665
    %v682 = vpack.c.b16 %v668, %v667
    %v683 = vpack.c.b16 %v670, %v669
    %v684 = vpack.c.b16 %v672, %v671
    %v685 = vpack.c.b16 %v674, %v673
    %v686 = vpack.c.b16 %v676, %v675
    %v687 = vpack.c.b16 %v678, %v677
    %v688 = vpack.c.b16 %v680, %v679
    %697 = vmatpush.bf16.msra.mxu0 %v688
    %698 = vmatpush.bf16.msra.mxu0 %v687
    %699 = vmatpush.bf16.msra.mxu0 %v686
    %700 = vmatpush.bf16.msra.mxu0 %v685
    %701 = vmatpush.bf16.msra.mxu0 %v684
    %702 = vmatpush.bf16.msra.mxu0 %v683
    %703 = vmatpush.bf16.msra.mxu0 %v682
    %704 = vmatpush.bf16.msra.mxu0 %v681
    %705 = vmatmul.bf16.gmra.mxu0 %v647
    %v706 = vpop.f32.mrf.mxu0
    %v707 = vadd.f32 %v639, %v706
    %v708 = vpop.f32.mrf.mxu0
    %v709 = vadd.f32 %v641, %v708
    %710 = vdwg.mxu0
    %s711 = scalar_lea.vmem %s4, 1
    %v712 = vld [vmem:[%s711] sm:$0x1]
    %v714 = vperm.slane %v712, 0
    %v716 = vadd.f32 %v707, %v714
    %v717 = vadd.f32 %v709, %v714
    %s718 = scalar_lea.vmem [#allocation8], 128
    %v719 = vld [vmem:[%s718] sm:$0xf]
    %v720 = vld [vmem:[%s718 + $0x4] sm:$0xf]
    %v721 = vld [vmem:[%s718 + $0x8] sm:$0xf]
    %v722 = vld [vmem:[%s718 + $0xc] sm:$0xf]
    %v723 = vld [vmem:[%s718 + $0x10] sm:$0xf]
    %v724 = vld [vmem:[%s718 + $0x14] sm:$0xf]
    %v725 = vld [vmem:[%s718 + $0x18] sm:$0xf]
    %v726 = vld [vmem:[%s718 + $0x1c] sm:$0xf]
    %v727 = vld [vmem:[%s718 + $0x20] sm:$0xf]
    %v728 = vld [vmem:[%s718 + $0x24] sm:$0xf]
    %v729 = vld [vmem:[%s718 + $0x28] sm:$0xf]
    %v730 = vld [vmem:[%s718 + $0x2c] sm:$0xf]
    %v731 = vld [vmem:[%s718 + $0x30] sm:$0xf]
    %v732 = vld [vmem:[%s718 + $0x34] sm:$0xf]
    %v733 = vld [vmem:[%s718 + $0x38] sm:$0xf]
    %v734 = vld [vmem:[%s718 + $0x3c] sm:$0xf]
    %s735 = scalar_lea.vmem [#allocation8], 192
    %v736 = vld [vmem:[%s735] sm:$0xf]
    %v737 = vld [vmem:[%s735 + $0x4] sm:$0xf]
    %v738 = vld [vmem:[%s735 + $0x8] sm:$0xf]
    %v739 = vld [vmem:[%s735 + $0xc] sm:$0xf]
    %v740 = vld [vmem:[%s735 + $0x10] sm:$0xf]
    %v741 = vld [vmem:[%s735 + $0x14] sm:$0xf]
    %v742 = vld [vmem:[%s735 + $0x18] sm:$0xf]
    %v743 = vld [vmem:[%s735 + $0x1c] sm:$0xf]
    %v744 = vld [vmem:[%s735 + $0x20] sm:$0xf]
    %v745 = vld [vmem:[%s735 + $0x24] sm:$0xf]
    %v746 = vld [vmem:[%s735 + $0x28] sm:$0xf]
    %v747 = vld [vmem:[%s735 + $0x2c] sm:$0xf]
    %v748 = vld [vmem:[%s735 + $0x30] sm:$0xf]
    %v749 = vld [vmem:[%s735 + $0x34] sm:$0xf]
    %v750 = vld [vmem:[%s735 + $0x38] sm:$0xf]
    %v751 = vld [vmem:[%s735 + $0x3c] sm:$0xf]
    %v768 = vunpack.c.l.b16 %v736
    %v769 = vunpack.c.l.b16 %v737
    %v770 = vunpack.c.l.b16 %v738
    %v771 = vunpack.c.l.b16 %v739
    %v772 = vunpack.c.l.b16 %v740
    %v773 = vunpack.c.l.b16 %v741
    %v774 = vunpack.c.l.b16 %v742
    %v775 = vunpack.c.l.b16 %v743
    %v776 = vunpack.c.l.b16 %v744
    %v777 = vunpack.c.l.b16 %v745
    %v778 = vunpack.c.l.b16 %v746
    %v779 = vunpack.c.l.b16 %v747
    %v780 = vunpack.c.l.b16 %v748
    %v781 = vunpack.c.l.b16 %v749
    %v782 = vunpack.c.l.b16 %v750
    %v783 = vunpack.c.l.b16 %v751
    %v784 = vpack.c.b16 %v769, %v768
    %v785 = vpack.c.b16 %v771, %v770
    %v786 = vpack.c.b16 %v773, %v772
    %v787 = vpack.c.b16 %v775, %v774
    %v788 = vpack.c.b16 %v777, %v776
    %v789 = vpack.c.b16 %v779, %v778
    %v790 = vpack.c.b16 %v781, %v780
    %v791 = vpack.c.b16 %v783, %v782
    %800 = vmatpush.bf16.msra.mxu0 %v791
    %801 = vmatpush.bf16.msra.mxu0 %v790
    %802 = vmatpush.bf16.msra.mxu0 %v789
    %803 = vmatpush.bf16.msra.mxu0 %v788
    %804 = vmatpush.bf16.msra.mxu0 %v787
    %805 = vmatpush.bf16.msra.mxu0 %v786
    %806 = vmatpush.bf16.msra.mxu0 %v785
    %807 = vmatpush.bf16.msra.mxu0 %v784
    %808 = vmatmul.bf16.gmra.mxu0 %v522
    %v809 = vpop.f32.mrf.mxu0
    %v810 = vadd.f32 0.0, %v809
    %v811 = vpop.f32.mrf.mxu0
    %v812 = vadd.f32 0.0, %v811
    %813 = vdwg.mxu0
    %v816 = vunpack.c.l.b16 %v545
    %v817 = vunpack.c.l.b16 %v546
    %v818 = vpack.c.b16 %v817, %v816
    %v836 = vunpack.c.l.b16 %v719
    %v837 = vunpack.c.l.b16 %v720
    %v838 = vunpack.c.l.b16 %v721
    %v839 = vunpack.c.l.b16 %v722
    %v840 = vunpack.c.l.b16 %v723
    %v841 = vunpack.c.l.b16 %v724
    %v842 = vunpack.c.l.b16 %v725
    %v843 = vunpack.c.l.b16 %v726
    %v844 = vunpack.c.l.b16 %v727
    %v845 = vunpack.c.l.b16 %v728
    %v846 = vunpack.c.l.b16 %v729
    %v847 = vunpack.c.l.b16 %v730
    %v848 = vunpack.c.l.b16 %v731
    %v849 = vunpack.c.l.b16 %v732
    %v850 = vunpack.c.l.b16 %v733
    %v851 = vunpack.c.l.b16 %v734
    %v852 = vpack.c.b16 %v837, %v836
    %v853 = vpack.c.b16 %v839, %v838
    %v854 = vpack.c.b16 %v841, %v840
    %v855 = vpack.c.b16 %v843, %v842
    %v856 = vpack.c.b16 %v845, %v844
    %v857 = vpack.c.b16 %v847, %v846
    %v858 = vpack.c.b16 %v849, %v848
    %v859 = vpack.c.b16 %v851, %v850
    %868 = vmatpush.bf16.msra.mxu0 %v859
    %869 = vmatpush.bf16.msra.mxu0 %v858
    %870 = vmatpush.bf16.msra.mxu0 %v857
    %871 = vmatpush.bf16.msra.mxu0 %v856
    %872 = vmatpush.bf16.msra.mxu0 %v855
    %873 = vmatpush.bf16.msra.mxu0 %v854
    %874 = vmatpush.bf16.msra.mxu0 %v853
    %875 = vmatpush.bf16.msra.mxu0 %v852
    %876 = vmatmul.bf16.gmra.mxu0 %v818
    %v877 = vpop.f32.mrf.mxu0
    %v878 = vadd.f32 %v810, %v877
    %v879 = vpop.f32.mrf.mxu0
    %v880 = vadd.f32 %v812, %v879
    %881 = vdwg.mxu0
    %s882 = scalar_lea.vmem [#allocation10], 1
    %v883 = vld [vmem:[%s882] sm:$0x1]
    %v885 = vperm.slane %v883, 0
    %v887 = vadd.f32 %v878, %v885
    %v888 = vadd.f32 %v880, %v885
    %v889 = vmax.f32 %v716, 0.0
    %v890 = vmax.f32 %v717, 0.0
    %v891 = vmax.f32 %v887, 0.0
    %v892 = vmax.f32 %v888, 0.0
    %v893 = vpack.c.bf16 %v889, %v889
    %v894 = vpack.c.bf16 %v890, %v890
    %v895 = vpack.c.bf16 %v891, %v891
    %v896 = vpack.c.bf16 %v892, %v892
    %v899 = vunpack.c.l.b16 %v893
    %v900 = vunpack.c.l.b16 %v894
    %v901 = vpack.c.b16 %v900, %v899
    %v905 = vunpack.c.l.b16 %v895
    %v906 = vunpack.c.l.b16 %v896
    %v907 = vpack.c.b16 %v906, %v905
    %909 = vmatpush.bf16.msra.mxu0 0
    %910 = vmatpush.bf16.msra.mxu0 0
    %911 = vmatpush.bf16.msra.mxu0 0
    %912 = vmatpush.bf16.msra.mxu0 0
    %913 = vmatpush.bf16.msra.mxu0 0
    %914 = vmatpush.bf16.msra.mxu0 0
    %915 = vmatpush.bf16.msra.mxu0 %v907
    %916 = vmatpush.bf16.msra.mxu0 %v901
    %917 = vmatmul.bf16.gmra.mxu0 %v138
    %v918 = vpop.f32.mrf.mxu0
    %v919 = vadd.f32 0.0, %v918
    %v920 = vpop.f32.mrf.mxu0
    %v921 = vadd.f32 0.0, %v920
    %922 = vmatmul.bf16.gmra.mxu0 %v141
    %v923 = vpop.f32.mrf.mxu0
    %v924 = vadd.f32 0.0, %v923
    %v925 = vpop.f32.mrf.mxu0
    %v926 = vadd.f32 0.0, %v925
    %927 = vdwg.mxu0
    %v928 = vpack.c.bf16 %v919, %v919
    %v929 = vpack.c.bf16 %v921, %v921
    %v930 = vpack.c.bf16 %v924, %v924
    %v931 = vpack.c.bf16 %v926, %v926
    %s932 = scalar_lea.vmem [#allocation7], 256
    %v933 = vld [vmem:[%s932] sm:$0xf]
    %v934 = vld [vmem:[%s932 + $0x4] sm:$0xf]
    %v935 = vld [vmem:[%s932 + $0x8] sm:$0xf]
    %v936 = vld [vmem:[%s932 + $0xc] sm:$0xf]
    %v937 = vld [vmem:[%s932 + $0x10] sm:$0xf]
    %v938 = vld [vmem:[%s932 + $0x14] sm:$0xf]
    %v939 = vld [vmem:[%s932 + $0x18] sm:$0xf]
    %v940 = vld [vmem:[%s932 + $0x1c] sm:$0xf]
    %v941 = vld [vmem:[%s932 + $0x20] sm:$0xf]
    %v942 = vld [vmem:[%s932 + $0x24] sm:$0xf]
    %v943 = vld [vmem:[%s932 + $0x28] sm:$0xf]
    %v944 = vld [vmem:[%s932 + $0x2c] sm:$0xf]
    %v945 = vld [vmem:[%s932 + $0x30] sm:$0xf]
    %v946 = vld [vmem:[%s932 + $0x34] sm:$0xf]
    %v947 = vld [vmem:[%s932 + $0x38] sm:$0xf]
    %v948 = vld [vmem:[%s932 + $0x3c] sm:$0xf]
    %s949 = scalar_lea.vmem [#allocation7], 320
    %v950 = vld [vmem:[%s949] sm:$0xf]
    %v951 = vld [vmem:[%s949 + $0x4] sm:$0xf]
    %v952 = vld [vmem:[%s949 + $0x8] sm:$0xf]
    %v953 = vld [vmem:[%s949 + $0xc] sm:$0xf]
    %v954 = vld [vmem:[%s949 + $0x10] sm:$0xf]
    %v955 = vld [vmem:[%s949 + $0x14] sm:$0xf]
    %v956 = vld [vmem:[%s949 + $0x18] sm:$0xf]
    %v957 = vld [vmem:[%s949 + $0x1c] sm:$0xf]
    %v958 = vld [vmem:[%s949 + $0x20] sm:$0xf]
    %v959 = vld [vmem:[%s949 + $0x24] sm:$0xf]
    %v960 = vld [vmem:[%s949 + $0x28] sm:$0xf]
    %v961 = vld [vmem:[%s949 + $0x2c] sm:$0xf]
    %v962 = vld [vmem:[%s949 + $0x30] sm:$0xf]
    %v963 = vld [vmem:[%s949 + $0x34] sm:$0xf]
    %v964 = vld [vmem:[%s949 + $0x38] sm:$0xf]
    %v965 = vld [vmem:[%s949 + $0x3c] sm:$0xf]
    %v982 = vunpack.c.l.b16 %v950
    %v983 = vunpack.c.l.b16 %v951
    %v984 = vunpack.c.l.b16 %v952
    %v985 = vunpack.c.l.b16 %v953
    %v986 = vunpack.c.l.b16 %v954
    %v987 = vunpack.c.l.b16 %v955
    %v988 = vunpack.c.l.b16 %v956
    %v989 = vunpack.c.l.b16 %v957
    %v990 = vunpack.c.l.b16 %v958
    %v991 = vunpack.c.l.b16 %v959
    %v992 = vunpack.c.l.b16 %v960
    %v993 = vunpack.c.l.b16 %v961
    %v994 = vunpack.c.l.b16 %v962
    %v995 = vunpack.c.l.b16 %v963
    %v996 = vunpack.c.l.b16 %v964
    %v997 = vunpack.c.l.b16 %v965
    %v998 = vpack.c.b16 %v983, %v982
    %v999 = vpack.c.b16 %v985, %v984
    %v1000 = vpack.c.b16 %v987, %v986
    %v1001 = vpack.c.b16 %v989, %v988
    %v1002 = vpack.c.b16 %v991, %v990
    %v1003 = vpack.c.b16 %v993, %v992
    %v1004 = vpack.c.b16 %v995, %v994
    %v1005 = vpack.c.b16 %v997, %v996
    %1014 = vmatpush.bf16.msra.mxu0 %v1005
    %1015 = vmatpush.bf16.msra.mxu0 %v1004
    %1016 = vmatpush.bf16.msra.mxu0 %v1003
    %1017 = vmatpush.bf16.msra.mxu0 %v1002
    %1018 = vmatpush.bf16.msra.mxu0 %v1001
    %1019 = vmatpush.bf16.msra.mxu0 %v1000
    %1020 = vmatpush.bf16.msra.mxu0 %v999
    %1021 = vmatpush.bf16.msra.mxu0 %v998
    %1022 = vmatmul.bf16.gmra.mxu0 %v901
    %v1023 = vpop.f32.mrf.mxu0
    %v1024 = vadd.f32 0.0, %v1023
    %v1025 = vpop.f32.mrf.mxu0
    %1026 = vdwg.mxu0
    %v1029 = vunpack.c.l.b16 %v928
    %v1030 = vunpack.c.l.b16 %v929
    %v1031 = vpack.c.b16 %v1030, %v1029
    %v1049 = vunpack.c.l.b16 %v933
    %v1050 = vunpack.c.l.b16 %v934
    %v1051 = vunpack.c.l.b16 %v935
    %v1052 = vunpack.c.l.b16 %v936
    %v1053 = vunpack.c.l.b16 %v937
    %v1054 = vunpack.c.l.b16 %v938
    %v1055 = vunpack.c.l.b16 %v939
    %v1056 = vunpack.c.l.b16 %v940
    %v1057 = vunpack.c.l.b16 %v941
    %v1058 = vunpack.c.l.b16 %v942
    %v1059 = vunpack.c.l.b16 %v943
    %v1060 = vunpack.c.l.b16 %v944
    %v1061 = vunpack.c.l.b16 %v945
    %v1062 = vunpack.c.l.b16 %v946
    %v1063 = vunpack.c.l.b16 %v947
    %v1064 = vunpack.c.l.b16 %v948
    %v1065 = vpack.c.b16 %v1050, %v1049
    %v1066 = vpack.c.b16 %v1052, %v1051
    %v1067 = vpack.c.b16 %v1054, %v1053
    %v1068 = vpack.c.b16 %v1056, %v1055
    %v1069 = vpack.c.b16 %v1058, %v1057
    %v1070 = vpack.c.b16 %v1060, %v1059
    %v1071 = vpack.c.b16 %v1062, %v1061
    %v1072 = vpack.c.b16 %v1064, %v1063
    %1081 = vmatpush.bf16.msra.mxu0 %v1072
    %1082 = vmatpush.bf16.msra.mxu0 %v1071
    %1083 = vmatpush.bf16.msra.mxu0 %v1070
    %1084 = vmatpush.bf16.msra.mxu0 %v1069
    %1085 = vmatpush.bf16.msra.mxu0 %v1068
    %1086 = vmatpush.bf16.msra.mxu0 %v1067
    %1087 = vmatpush.bf16.msra.mxu0 %v1066
    %1088 = vmatpush.bf16.msra.mxu0 %v1065
    %1089 = vmatmul.bf16.gmra.mxu0 %v1031
    %v1090 = vpop.f32.mrf.mxu0
    %v1091 = vadd.f32 %v1024, %v1090
    %v1092 = vpop.f32.mrf.mxu0
    %1093 = vdwg.mxu0
    %s1094 = scalar_lea.vmem %s4, 2
    %v1095 = vld [vmem:[%s1094] sm:$0x1]
    %v1097 = vperm.slane %v1095, 0
    %v1099 = vadd.f32 %v1091, %v1097
    %s1100 = scalar_lea.vmem [#allocation8], 256
    %v1101 = vld [vmem:[%s1100] sm:$0xf]
    %v1102 = vld [vmem:[%s1100 + $0x4] sm:$0xf]
    %v1103 = vld [vmem:[%s1100 + $0x8] sm:$0xf]
    %v1104 = vld [vmem:[%s1100 + $0xc] sm:$0xf]
    %v1105 = vld [vmem:[%s1100 + $0x10] sm:$0xf]
    %v1106 = vld [vmem:[%s1100 + $0x14] sm:$0xf]
    %v1107 = vld [vmem:[%s1100 + $0x18] sm:$0xf]
    %v1108 = vld [vmem:[%s1100 + $0x1c] sm:$0xf]
    %v1109 = vld [vmem:[%s1100 + $0x20] sm:$0xf]
    %v1110 = vld [vmem:[%s1100 + $0x24] sm:$0xf]
    %v1111 = vld [vmem:[%s1100 + $0x28] sm:$0xf]
    %v1112 = vld [vmem:[%s1100 + $0x2c] sm:$0xf]
    %v1113 = vld [vmem:[%s1100 + $0x30] sm:$0xf]
    %v1114 = vld [vmem:[%s1100 + $0x34] sm:$0xf]
    %v1115 = vld [vmem:[%s1100 + $0x38] sm:$0xf]
    %v1116 = vld [vmem:[%s1100 + $0x3c] sm:$0xf]
    %s1117 = scalar_lea.vmem [#allocation8], 320
    %v1118 = vld [vmem:[%s1117] sm:$0xf]
    %v1119 = vld [vmem:[%s1117 + $0x4] sm:$0xf]
    %v1120 = vld [vmem:[%s1117 + $0x8] sm:$0xf]
    %v1121 = vld [vmem:[%s1117 + $0xc] sm:$0xf]
    %v1122 = vld [vmem:[%s1117 + $0x10] sm:$0xf]
    %v1123 = vld [vmem:[%s1117 + $0x14] sm:$0xf]
    %v1124 = vld [vmem:[%s1117 + $0x18] sm:$0xf]
    %v1125 = vld [vmem:[%s1117 + $0x1c] sm:$0xf]
    %v1126 = vld [vmem:[%s1117 + $0x20] sm:$0xf]
    %v1127 = vld [vmem:[%s1117 + $0x24] sm:$0xf]
    %v1128 = vld [vmem:[%s1117 + $0x28] sm:$0xf]
    %v1129 = vld [vmem:[%s1117 + $0x2c] sm:$0xf]
    %v1130 = vld [vmem:[%s1117 + $0x30] sm:$0xf]
    %v1131 = vld [vmem:[%s1117 + $0x34] sm:$0xf]
    %v1132 = vld [vmem:[%s1117 + $0x38] sm:$0xf]
    %v1133 = vld [vmem:[%s1117 + $0x3c] sm:$0xf]
    %v1150 = vunpack.c.l.b16 %v1118
    %v1151 = vunpack.c.l.b16 %v1119
    %v1152 = vunpack.c.l.b16 %v1120
    %v1153 = vunpack.c.l.b16 %v1121
    %v1154 = vunpack.c.l.b16 %v1122
    %v1155 = vunpack.c.l.b16 %v1123
    %v1156 = vunpack.c.l.b16 %v1124
    %v1157 = vunpack.c.l.b16 %v1125
    %v1158 = vunpack.c.l.b16 %v1126
    %v1159 = vunpack.c.l.b16 %v1127
    %v1160 = vunpack.c.l.b16 %v1128
    %v1161 = vunpack.c.l.b16 %v1129
    %v1162 = vunpack.c.l.b16 %v1130
    %v1163 = vunpack.c.l.b16 %v1131
    %v1164 = vunpack.c.l.b16 %v1132
    %v1165 = vunpack.c.l.b16 %v1133
    %v1166 = vpack.c.b16 %v1151, %v1150
    %v1167 = vpack.c.b16 %v1153, %v1152
    %v1168 = vpack.c.b16 %v1155, %v1154
    %v1169 = vpack.c.b16 %v1157, %v1156
    %v1170 = vpack.c.b16 %v1159, %v1158
    %v1171 = vpack.c.b16 %v1161, %v1160
    %v1172 = vpack.c.b16 %v1163, %v1162
    %v1173 = vpack.c.b16 %v1165, %v1164
    %1182 = vmatpush.bf16.msra.mxu0 %v1173
    %1183 = vmatpush.bf16.msra.mxu0 %v1172
    %1184 = vmatpush.bf16.msra.mxu0 %v1171
    %1185 = vmatpush.bf16.msra.mxu0 %v1170
    %1186 = vmatpush.bf16.msra.mxu0 %v1169
    %1187 = vmatpush.bf16.msra.mxu0 %v1168
    %1188 = vmatpush.bf16.msra.mxu0 %v1167
    %1189 = vmatpush.bf16.msra.mxu0 %v1166
    %1190 = vmatmul.bf16.gmra.mxu0 %v907
    %v1191 = vpop.f32.mrf.mxu0
    %v1192 = vadd.f32 0.0, %v1191
    %v1193 = vpop.f32.mrf.mxu0
    %v1194 = vadd.f32 0.0, %v1193
    %1195 = vdwg.mxu0
    %v1198 = vunpack.c.l.b16 %v930
    %v1199 = vunpack.c.l.b16 %v931
    %v1200 = vpack.c.b16 %v1199, %v1198
    %v1218 = vunpack.c.l.b16 %v1101
    %v1219 = vunpack.c.l.b16 %v1102
    %v1220 = vunpack.c.l.b16 %v1103
    %v1221 = vunpack.c.l.b16 %v1104
    %v1222 = vunpack.c.l.b16 %v1105
    %v1223 = vunpack.c.l.b16 %v1106
    %v1224 = vunpack.c.l.b16 %v1107
    %v1225 = vunpack.c.l.b16 %v1108
    %v1226 = vunpack.c.l.b16 %v1109
    %v1227 = vunpack.c.l.b16 %v1110
    %v1228 = vunpack.c.l.b16 %v1111
    %v1229 = vunpack.c.l.b16 %v1112
    %v1230 = vunpack.c.l.b16 %v1113
    %v1231 = vunpack.c.l.b16 %v1114
    %v1232 = vunpack.c.l.b16 %v1115
    %v1233 = vunpack.c.l.b16 %v1116
    %v1234 = vpack.c.b16 %v1219, %v1218
    %v1235 = vpack.c.b16 %v1221, %v1220
    %v1236 = vpack.c.b16 %v1223, %v1222
    %v1237 = vpack.c.b16 %v1225, %v1224
    %v1238 = vpack.c.b16 %v1227, %v1226
    %v1239 = vpack.c.b16 %v1229, %v1228
    %v1240 = vpack.c.b16 %v1231, %v1230
    %v1241 = vpack.c.b16 %v1233, %v1232
    %1250 = vmatpush.bf16.msra.mxu0 %v1241
    %1251 = vmatpush.bf16.msra.mxu0 %v1240
    %1252 = vmatpush.bf16.msra.mxu0 %v1239
    %1253 = vmatpush.bf16.msra.mxu0 %v1238
    %1254 = vmatpush.bf16.msra.mxu0 %v1237
    %1255 = vmatpush.bf16.msra.mxu0 %v1236
    %1256 = vmatpush.bf16.msra.mxu0 %v1235
    %1257 = vmatpush.bf16.msra.mxu0 %v1234
    %1258 = vmatmul.bf16.gmra.mxu0 %v1200
    %v1259 = vpop.f32.mrf.mxu0
    %v1260 = vadd.f32 %v1192, %v1259
    %v1261 = vpop.f32.mrf.mxu0
    %v1262 = vadd.f32 %v1194, %v1261
    %1263 = vdwg.mxu0
    %s1264 = scalar_lea.vmem [#allocation10], 2
    %v1265 = vld [vmem:[%s1264] sm:$0x1]
    %v1267 = vperm.slane %v1265, 0
    %v1269 = vadd.f32 %v1260, %v1267
    %v1270 = vadd.f32 %v1262, %v1267
    %v1271 = vmax.f32 %v1099, 0.0
    %v1272 = vmax.f32 %v1269, 0.0
    %v1273 = vmax.f32 %v1270, 0.0
    %1274 = vst [vmem:[#allocation11] sm:$0xff] %v1271
    %1275 = vst [vmem:[#allocation12] sm:$0xff] %v1272
    %1276 = vst [vmem:[#allocation12 + $0x8] sm:$0xff] %v1273
    // Predicated region
    $region46: #{hgcn_forward.1} parent=1 // pred_check
      _
    $region47: #{hgcn_forward.1} parent=1 // pred_check_branch
      %1278 = sbr.rel (0) target = $region49
    $region48: #{hgcn_forward.1} parent=1 // pred_region
      %1280 = vsyncadd [#allocation4], 0
      %s1282 = sshll.u32 [#allocation11], 4
      %s1283 = int_to_ptr.vmem [resolvable:$true] %s1282
      %s1284 = sshll.u32 %s6, 4
      %s1285 = int_to_ptr.hbm [resolvable:$true] %s1284
      %1287 = dma.vmem_to_hbm [thread:$0]  %s1283, 128, %s1285, [#allocation4]
    $region49: #{hgcn_forward.1} parent=1 // pred_fallthru
      _
    // Predicated region
    $region50: #{hgcn_forward.1} parent=1 // pred_check
      _
    $region51: #{hgcn_forward.1} parent=1 // pred_check_branch
      %1289 = sbr.rel (0) target = $region53
    $region52: #{hgcn_forward.1} parent=1 // pred_region
      %1291 = vsyncadd [#allocation13], 0
      %s1292 = sshll.u32 [#allocation12], 4
      %s1293 = int_to_ptr.vmem [resolvable:$true] %s1292
      %s1294 = sshll.u32 %s7, 4
      %s1295 = int_to_ptr.hbm [resolvable:$true] %s1294
      %1300 = dma.vmem_to_hbm [thread:$0]  %s1293, 256, %s1295, [#allocation13], 128, 128, 8
    $region53: #{hgcn_forward.1} parent=1 // pred_fallthru
      _
    // Predicated region
    $region54: #{hgcn_forward.1} parent=1 // pred_check
      _
    $region55: #{hgcn_forward.1} parent=1 // pred_check_branch
      %1302 = sbr.rel (0) target = $region57
    $region56: #{hgcn_forward.1} parent=1 // pred_region
      %1304 = dma.done [#allocation4], 128
    $region57: #{hgcn_forward.1} parent=1 // pred_fallthru
      _
    // Predicated region
    $region58: #{hgcn_forward.1} parent=1 // pred_check
      _
    $region59: #{hgcn_forward.1} parent=1 // pred_check_branch
      %1306 = sbr.rel (0) target = $region61
    $region60: #{hgcn_forward.1} parent=1 // pred_region
      %1308 = dma.done [#allocation13], 256
    $region61: #{hgcn_forward.1} parent=1 // pred_fallthru
      _
    %1309 = vsyncpa [#allocation3], 1
    %1310 = vsyncpa [#allocation6], 1
    %1311 = vsyncpa [#allocation9], 1
    %1312 = vsyncpa [#allocation4], 1
    %1313 = vsyncpa [#allocation13], 1

</llo_original>
